<compile_context>
chip_gen: v5e
topology: v5e:2x2
jax: 0.10.0
libtpu: 0.0.40
codegen_flags: <defaults>
</compile_context>

<pallas_src>
import functools

import jax
import jax.numpy as jnp
from jax.experimental import pallas as pl
from jax.experimental.pallas import tpu as pltpu

_NEG_BIG = -1e30  # finite "-inf": exp() underflows to exactly 0, no inf/nan math


def _round_up(x, m):
    return (x + m - 1) // m * m


def _skipgram_kernel(n_pad, n_valid, v_valid, tile_v, n_tiles,
                     idx_ref,                      # scalar prefetch (SMEM)
                     emb_hbm, wt_ref, b_ref,       # inputs
                     out_ref,                      # output (VMEM-resident slab)
                     embeds, sems, m_ref, l_ref):  # scratch
    j = pl.program_id(0)

    def gather_rows():
        # Read all SMEM scalars before any DMA wait (wait breaks sst->sld
        # forwarding) and put every row DMA in flight before the first wait.
        rows = [idx_ref[i] for i in range(n_pad)]
        copies = [
            pltpu.make_async_copy(emb_hbm.at[pl.ds(rows[i], 1), :],
                                  embeds.at[pl.ds(i, 1), :],
                                  sems.at[i])
            for i in range(n_pad)
        ]
        for c in copies:
            c.start()
        for c in copies:
            c.wait()

    def tile_mask():
        # Exclude padded rows / padded vocab columns from the logsumexp.
        mask = None
        if n_valid != n_pad:
            row = jax.lax.broadcasted_iota(jnp.int32, (n_pad, tile_v), 0)
            mask = row < n_valid
        if v_valid != n_tiles * tile_v:
            col = j * tile_v + jax.lax.broadcasted_iota(jnp.int32, (n_pad, tile_v), 1)
            cmask = col < v_valid
            mask = cmask if mask is None else jnp.logical_and(mask, cmask)
        return mask

    if n_tiles == 1:
        # ---- fast path: everything in one grid step, no (m, l) carry ----
        gather_rows()
        logits = jnp.dot(embeds[...], wt_ref[...],
                         preferred_element_type=jnp.float32) + b_ref[...]
        mask = tile_mask()
        x = logits if mask is None else jnp.where(mask, logits, _NEG_BIG)
        m = jnp.max(jnp.max(x, axis=-1, keepdims=True), axis=0, keepdims=True)
        l = jnp.sum(jnp.sum(jnp.exp(x - m), axis=-1, keepdims=True),
                    axis=0, keepdims=True)
        lse = m + jnp.log(l)                                   # (1, 1)
        out_ref[0] = logits - lse
    else:
        # ---- streaming path: single pass, online logsumexp carry ----
        @pl.when(j == 0)
        def _():
            gather_rows()
            m_ref[...] = jnp.full_like(m_ref, _NEG_BIG)
            l_ref[...] = jnp.zeros_like(l_ref)

        logits = jnp.dot(embeds[...], wt_ref[...],
                         preferred_element_type=jnp.float32) + b_ref[...]
        out_ref[j] = logits              # stash raw logits in the resident slab

        mask = tile_mask()
        x = logits if mask is None else jnp.where(mask, logits, _NEG_BIG)
        m_prev = m_ref[...]                                    # (1, 1)
        l_prev = l_ref[...]                                    # (1, 1)
        m_tile = jnp.max(jnp.max(x, axis=-1, keepdims=True), axis=0, keepdims=True)
        m_new = jnp.maximum(m_prev, m_tile)
        p_sum = jnp.sum(jnp.sum(jnp.exp(x - m_new), axis=-1, keepdims=True),
                        axis=0, keepdims=True)
        m_ref[...] = m_new
        l_ref[...] = l_prev * jnp.exp(m_prev - m_new) + p_sum

        @pl.when(j == n_tiles - 1)
        def _():
            lse = m_ref[...] + jnp.log(l_ref[...])             # (1, 1)
            out_ref[...] = out_ref[...] - lse.reshape(1, 1, 1)


def prepare_skipgram_params(emb_table, lin_weight, lin_bias, *, max_tile_v=8192):
    """One-time parameter prep (padding + weight transpose). Not in the per-call path."""
    vocab, dim = emb_table.shape
    assert lin_weight.shape == (vocab, dim) and lin_bias.shape == (vocab,)

    d_pad = _round_up(dim, 8)                     # f32: sublane multiple of 8 suffices
    tile_v = min(_round_up(vocab, 128), max(128, (max_tile_v // 128) * 128))
    v_pad = _round_up(vocab, tile_v)

    emb_p = jnp.zeros((vocab, d_pad), jnp.float32).at[:, :dim].set(emb_table)
    w_t = jnp.zeros((d_pad, v_pad), jnp.float32).at[:dim, :vocab].set(lin_weight.T)
    b_p = jnp.zeros((1, v_pad), jnp.float32).at[:, :vocab].set(lin_bias)

    meta = dict(vocab=vocab, dim=dim, d_pad=d_pad, v_pad=v_pad, tile_v=tile_v)
    return emb_p, w_t, b_p, meta


def skip_gram_forward(indices, params):
    """indices: (N,) int; params: output of prepare_skipgram_params."""
    emb_p, w_t, b_p, meta = params
    vocab, d_pad, v_pad, tile_v = meta["vocab"], meta["d_pad"], meta["v_pad"], meta["tile_v"]

    n = int(indices.shape[0])
    n_pad = _round_up(n, 8)
    n_tiles = v_pad // tile_v

    # Clamp (no OOB DMA) and pad indices; padded slots gather row 0 but are
    # excluded from the softmax by the in-kernel row mask.
    idx = jnp.clip(indices.astype(jnp.int32), 0, vocab - 1)
    idx = jnp.pad(idx, (0, n_pad - n))

    kernel = functools.partial(_skipgram_kernel, n_pad, n, vocab, tile_v, n_tiles)

    # VMEM budget: resident logits slab + double-buffered W^T / bias tiles +
    # gathered rows, with 2x headroom; cap well under v7x's 64 MiB physical.
    est = (n_tiles * n_pad * tile_v * 4           # resident output slab
           + 2 * d_pad * tile_v * 4               # W^T double buffer
           + 2 * tile_v * 4                       # bias double buffer
           + n_pad * d_pad * 4)                   # gathered embeddings
    vmem_limit = int(min(48 * 1024 * 1024, max(32 * 1024 * 1024, 2 * est)))

    out = pl.pallas_call(
        kernel,
        out_shape=jax.ShapeDtypeStruct((n_tiles, n_pad, tile_v), jnp.float32),
        grid_spec=pltpu.PrefetchScalarGridSpec(
            num_scalar_prefetch=1,                        # indices -> SMEM
            grid=(n_tiles,),                              # vocab tiles, single pass
            in_specs=[
                pl.BlockSpec(memory_space=pl.ANY),                      # emb table (HBM)
                pl.BlockSpec((d_pad, tile_v), lambda j, _idx: (0, j)),  # W^T tile
                pl.BlockSpec((1, tile_v), lambda j, _idx: (0, j)),      # bias tile
            ],
            out_specs=pl.BlockSpec((n_tiles, n_pad, tile_v),
                                   lambda j, _idx: (0, 0, 0)),          # VMEM-resident
            scratch_shapes=[
                pltpu.VMEM((n_pad, d_pad), jnp.float32),   # gathered embeddings
                pltpu.SemaphoreType.DMA((n_pad,)),         # per-row gather sems
                pltpu.VMEM((1, 1), jnp.float32),           # running max
                pltpu.VMEM((1, 1), jnp.float32),           # running sum
            ],
        ),
        compiler_params=pltpu.CompilerParams(
            dimension_semantics=("arbitrary",),            # carry + resident output
            vmem_limit_bytes=vmem_limit),
    )(idx, emb_p, w_t, b_p)

    # (n_tiles, n_pad, tile_v) -> (n_pad, v_pad), strip padding, PyTorch (1, N*V) view.
    out2d = jnp.transpose(out, (1, 0, 2)).reshape(n_pad, v_pad)
    return out2d[:n, :vocab].reshape(1, n * vocab)


def _reference(indices, emb_table, lin_weight, lin_bias):
    embeds = emb_table[indices]                              # (N, D)
    logits = embeds @ lin_weight.T + lin_bias                # (N, V)
    flat = logits.reshape(1, -1)
    return flat - jax.scipy.special.logsumexp(flat, axis=1, keepdims=True)


if __name__ == "__main__":
    key = jax.random.PRNGKey(0)

    def make_problem(k, vocab_size, embedding_dim, n_tokens):
        k_emb, k_w, k_b, k_idx = jax.random.split(k, 4)
        emb_table = jax.random.normal(k_emb, (vocab_size, embedding_dim), jnp.float32)
        bound = 1.0 / (embedding_dim ** 0.5)
        lin_weight = jax.random.uniform(k_w, (vocab_size, embedding_dim), jnp.float32,
                                        -bound, bound)
        lin_bias = jax.random.uniform(k_b, (vocab_size,), jnp.float32, -bound, bound)
        idx = jax.random.randint(k_idx, (n_tokens,), 0, vocab_size, jnp.int32)
        return emb_table, lin_weight, lin_bias, idx

    k1, k2 = jax.random.split(key)

    # 1) Shipped shape: vocab=64, embedding_dim=50 (Linear(50, vocab)), N=4.
    #    Exercises the n_tiles == 1 fast path (single grid step).
    emb, w, b, idx = make_problem(k1, 64, 50, 4)
    params = prepare_skipgram_params(emb, w, b)
    out = jax.block_until_ready(skip_gram_forward(idx, params))
    ref = _reference(idx, emb, w, b)
    assert out.shape == (1, 4 * 64)
    assert jnp.allclose(out, ref, atol=1e-5, rtol=1e-5), float(jnp.max(jnp.abs(out - ref)))

    # 2) Multi-tile streaming path: vocab=200 with tile_v forced to 128 -> 2 vocab
    #    tiles, exercising the online-LSE carry and the resident output slab.
    emb2, w2, b2, idx2 = make_problem(k2, 200, 50, 5)
    params2 = prepare_skipgram_params(emb2, w2, b2, max_tile_v=128)
    out2 = jax.block_until_ready(skip_gram_forward(idx2, params2))
    ref2 = _reference(idx2, emb2, w2, b2)
    assert out2.shape == (1, 5 * 200)
    assert jnp.allclose(out2, ref2, atol=1e-5, rtol=1e-5), float(jnp.max(jnp.abs(out2 - ref2)))

    print("KERNEL_OK")
</pallas_src>

<mosaic_0001>
module attributes {stable_mosaic.version = 11 : i64} {
  func.func @_skipgram_kernel(%arg0: i32, %arg1: memref<8xi32, #tpu.memory_space<smem>>, %arg2: memref<64x56xf32, #tpu.memory_space<any>>, %arg3: memref<56x128xf32, #tpu.memory_space<vmem>>, %arg4: memref<1x128xf32, #tpu.memory_space<vmem>>, %arg5: memref<1x8x128xf32, #tpu.memory_space<vmem>>, %arg6: memref<8x56xf32, #tpu.memory_space<vmem>>, %arg7: memref<8x!tpu.dma_semaphore, #tpu.memory_space<semaphore_mem>>, %arg8: memref<1x1xf32, #tpu.memory_space<vmem>>, %arg9: memref<1x1xf32, #tpu.memory_space<vmem>>) attributes {dimension_semantics = [#tpu.dimension_semantics<arbitrary>], iteration_bounds = array<i64: 1>, scalar_prefetch = 1 : i64, scratch_operands = 4 : i64, tpu.core_type = #tpu.core_type<tc>, window_params = [{}, {transform_indices = @transform_1, window_bounds = array<i64: 56, 128>}, {transform_indices = @transform_2, window_bounds = array<i64: 1, 128>}, {pipeline_mode = #tpu.pipeline_mode<synchronous>, transform_indices = @transform_3, window_bounds = array<i64: 1, 8, 128>}]} {
    %c0 = arith.constant 0 : index
    %0 = memref.load %arg1[%c0] : memref<8xi32, #tpu.memory_space<smem>>
    %c1 = arith.constant 1 : index
    %1 = memref.load %arg1[%c1] : memref<8xi32, #tpu.memory_space<smem>>
    %c2 = arith.constant 2 : index
    %2 = memref.load %arg1[%c2] : memref<8xi32, #tpu.memory_space<smem>>
    %c3 = arith.constant 3 : index
    %3 = memref.load %arg1[%c3] : memref<8xi32, #tpu.memory_space<smem>>
    %c4 = arith.constant 4 : index
    %4 = memref.load %arg1[%c4] : memref<8xi32, #tpu.memory_space<smem>>
    %c5 = arith.constant 5 : index
    %5 = memref.load %arg1[%c5] : memref<8xi32, #tpu.memory_space<smem>>
    %c6 = arith.constant 6 : index
    %6 = memref.load %arg1[%c6] : memref<8xi32, #tpu.memory_space<smem>>
    %c7 = arith.constant 7 : index
    %7 = memref.load %arg1[%c7] : memref<8xi32, #tpu.memory_space<smem>>
    %c0_i32 = arith.constant 0 : i32
    %c0_i32_0 = arith.constant 0 : i32
    %8 = tpu.memref_slice %arg2[%0, %c0_i32_0] : memref<64x56xf32, #tpu.memory_space<any>> -> memref<1x56xf32, #tpu.memory_space<any>>
    %c0_i32_1 = arith.constant 0 : i32
    %c0_i32_2 = arith.constant 0 : i32
    %9 = tpu.memref_slice %arg6[%c0_i32_1, %c0_i32_2] : memref<8x56xf32, #tpu.memory_space<vmem>> -> memref<1x56xf32, #tpu.memory_space<vmem>>
    %10 = tpu.memref_slice %arg7[%c0_i32] : memref<8x!tpu.dma_semaphore, #tpu.memory_space<semaphore_mem>> -> memref<1x!tpu.dma_semaphore, #tpu.memory_space<semaphore_mem>>
    %11 = tpu.memref_squeeze %10 : memref<1x!tpu.dma_semaphore, #tpu.memory_space<semaphore_mem>> -> memref<!tpu.dma_semaphore, #tpu.memory_space<semaphore_mem>>
    tpu.enqueue_dma source(%8 : memref<1x56xf32, #tpu.memory_space<any>>) target(%9 : memref<1x56xf32, #tpu.memory_space<vmem>>) target_semaphore(%11 : memref<!tpu.dma_semaphore, #tpu.memory_space<semaphore_mem>>)
    %c1_i32 = arith.constant 1 : i32
    %c0_i32_3 = arith.constant 0 : i32
    %12 = tpu.memref_slice %arg2[%1, %c0_i32_3] : memref<64x56xf32, #tpu.memory_space<any>> -> memref<1x56xf32, #tpu.memory_space<any>>
    %c1_i32_4 = arith.constant 1 : i32
    %c0_i32_5 = arith.constant 0 : i32
    %13 = tpu.memref_slice %arg6[%c1_i32_4, %c0_i32_5] : memref<8x56xf32, #tpu.memory_space<vmem>> -> memref<1x56xf32, #tpu.memory_space<vmem>>
    %14 = tpu.memref_slice %arg7[%c1_i32] : memref<8x!tpu.dma_semaphore, #tpu.memory_space<semaphore_mem>> -> memref<1x!tpu.dma_semaphore, #tpu.memory_space<semaphore_mem>>
    %15 = tpu.memref_squeeze %14 : memref<1x!tpu.dma_semaphore, #tpu.memory_space<semaphore_mem>> -> memref<!tpu.dma_semaphore, #tpu.memory_space<semaphore_mem>>
    tpu.enqueue_dma source(%12 : memref<1x56xf32, #tpu.memory_space<any>>) target(%13 : memref<1x56xf32, #tpu.memory_space<vmem>>) target_semaphore(%15 : memref<!tpu.dma_semaphore, #tpu.memory_space<semaphore_mem>>)
    %c2_i32 = arith.constant 2 : i32
    %c0_i32_6 = arith.constant 0 : i32
    %16 = tpu.memref_slice %arg2[%2, %c0_i32_6] : memref<64x56xf32, #tpu.memory_space<any>> -> memref<1x56xf32, #tpu.memory_space<any>>
    %c2_i32_7 = arith.constant 2 : i32
    %c0_i32_8 = arith.constant 0 : i32
    %17 = tpu.memref_slice %arg6[%c2_i32_7, %c0_i32_8] : memref<8x56xf32, #tpu.memory_space<vmem>> -> memref<1x56xf32, #tpu.memory_space<vmem>>
    %18 = tpu.memref_slice %arg7[%c2_i32] : memref<8x!tpu.dma_semaphore, #tpu.memory_space<semaphore_mem>> -> memref<1x!tpu.dma_semaphore, #tpu.memory_space<semaphore_mem>>
    %19 = tpu.memref_squeeze %18 : memref<1x!tpu.dma_semaphore, #tpu.memory_space<semaphore_mem>> -> memref<!tpu.dma_semaphore, #tpu.memory_space<semaphore_mem>>
    tpu.enqueue_dma source(%16 : memref<1x56xf32, #tpu.memory_space<any>>) target(%17 : memref<1x56xf32, #tpu.memory_space<vmem>>) target_semaphore(%19 : memref<!tpu.dma_semaphore, #tpu.memory_space<semaphore_mem>>)
    %c3_i32 = arith.constant 3 : i32
    %c0_i32_9 = arith.constant 0 : i32
    %20 = tpu.memref_slice %arg2[%3, %c0_i32_9] : memref<64x56xf32, #tpu.memory_space<any>> -> memref<1x56xf32, #tpu.memory_space<any>>
    %c3_i32_10 = arith.constant 3 : i32
    %c0_i32_11 = arith.constant 0 : i32
    %21 = tpu.memref_slice %arg6[%c3_i32_10, %c0_i32_11] : memref<8x56xf32, #tpu.memory_space<vmem>> -> memref<1x56xf32, #tpu.memory_space<vmem>>
    %22 = tpu.memref_slice %arg7[%c3_i32] : memref<8x!tpu.dma_semaphore, #tpu.memory_space<semaphore_mem>> -> memref<1x!tpu.dma_semaphore, #tpu.memory_space<semaphore_mem>>
    %23 = tpu.memref_squeeze %22 : memref<1x!tpu.dma_semaphore, #tpu.memory_space<semaphore_mem>> -> memref<!tpu.dma_semaphore, #tpu.memory_space<semaphore_mem>>
    tpu.enqueue_dma source(%20 : memref<1x56xf32, #tpu.memory_space<any>>) target(%21 : memref<1x56xf32, #tpu.memory_space<vmem>>) target_semaphore(%23 : memref<!tpu.dma_semaphore, #tpu.memory_space<semaphore_mem>>)
    %c4_i32 = arith.constant 4 : i32
    %c0_i32_12 = arith.constant 0 : i32
    %24 = tpu.memref_slice %arg2[%4, %c0_i32_12] : memref<64x56xf32, #tpu.memory_space<any>> -> memref<1x56xf32, #tpu.memory_space<any>>
    %c4_i32_13 = arith.constant 4 : i32
    %c0_i32_14 = arith.constant 0 : i32
    %25 = tpu.memref_slice %arg6[%c4_i32_13, %c0_i32_14] : memref<8x56xf32, #tpu.memory_space<vmem>> -> memref<1x56xf32, #tpu.memory_space<vmem>>
    %26 = tpu.memref_slice %arg7[%c4_i32] : memref<8x!tpu.dma_semaphore, #tpu.memory_space<semaphore_mem>> -> memref<1x!tpu.dma_semaphore, #tpu.memory_space<semaphore_mem>>
    %27 = tpu.memref_squeeze %26 : memref<1x!tpu.dma_semaphore, #tpu.memory_space<semaphore_mem>> -> memref<!tpu.dma_semaphore, #tpu.memory_space<semaphore_mem>>
    tpu.enqueue_dma source(%24 : memref<1x56xf32, #tpu.memory_space<any>>) target(%25 : memref<1x56xf32, #tpu.memory_space<vmem>>) target_semaphore(%27 : memref<!tpu.dma_semaphore, #tpu.memory_space<semaphore_mem>>)
    %c5_i32 = arith.constant 5 : i32
    %c0_i32_15 = arith.constant 0 : i32
    %28 = tpu.memref_slice %arg2[%5, %c0_i32_15] : memref<64x56xf32, #tpu.memory_space<any>> -> memref<1x56xf32, #tpu.memory_space<any>>
    %c5_i32_16 = arith.constant 5 : i32
    %c0_i32_17 = arith.constant 0 : i32
    %29 = tpu.memref_slice %arg6[%c5_i32_16, %c0_i32_17] : memref<8x56xf32, #tpu.memory_space<vmem>> -> memref<1x56xf32, #tpu.memory_space<vmem>>
    %30 = tpu.memref_slice %arg7[%c5_i32] : memref<8x!tpu.dma_semaphore, #tpu.memory_space<semaphore_mem>> -> memref<1x!tpu.dma_semaphore, #tpu.memory_space<semaphore_mem>>
    %31 = tpu.memref_squeeze %30 : memref<1x!tpu.dma_semaphore, #tpu.memory_space<semaphore_mem>> -> memref<!tpu.dma_semaphore, #tpu.memory_space<semaphore_mem>>
    tpu.enqueue_dma source(%28 : memref<1x56xf32, #tpu.memory_space<any>>) target(%29 : memref<1x56xf32, #tpu.memory_space<vmem>>) target_semaphore(%31 : memref<!tpu.dma_semaphore, #tpu.memory_space<semaphore_mem>>)
    %c6_i32 = arith.constant 6 : i32
    %c0_i32_18 = arith.constant 0 : i32
    %32 = tpu.memref_slice %arg2[%6, %c0_i32_18] : memref<64x56xf32, #tpu.memory_space<any>> -> memref<1x56xf32, #tpu.memory_space<any>>
    %c6_i32_19 = arith.constant 6 : i32
    %c0_i32_20 = arith.constant 0 : i32
    %33 = tpu.memref_slice %arg6[%c6_i32_19, %c0_i32_20] : memref<8x56xf32, #tpu.memory_space<vmem>> -> memref<1x56xf32, #tpu.memory_space<vmem>>
    %34 = tpu.memref_slice %arg7[%c6_i32] : memref<8x!tpu.dma_semaphore, #tpu.memory_space<semaphore_mem>> -> memref<1x!tpu.dma_semaphore, #tpu.memory_space<semaphore_mem>>
    %35 = tpu.memref_squeeze %34 : memref<1x!tpu.dma_semaphore, #tpu.memory_space<semaphore_mem>> -> memref<!tpu.dma_semaphore, #tpu.memory_space<semaphore_mem>>
    tpu.enqueue_dma source(%32 : memref<1x56xf32, #tpu.memory_space<any>>) target(%33 : memref<1x56xf32, #tpu.memory_space<vmem>>) target_semaphore(%35 : memref<!tpu.dma_semaphore, #tpu.memory_space<semaphore_mem>>)
    %c7_i32 = arith.constant 7 : i32
    %c0_i32_21 = arith.constant 0 : i32
    %36 = tpu.memref_slice %arg2[%7, %c0_i32_21] : memref<64x56xf32, #tpu.memory_space<any>> -> memref<1x56xf32, #tpu.memory_space<any>>
    %c7_i32_22 = arith.constant 7 : i32
    %c0_i32_23 = arith.constant 0 : i32
    %37 = tpu.memref_slice %arg6[%c7_i32_22, %c0_i32_23] : memref<8x56xf32, #tpu.memory_space<vmem>> -> memref<1x56xf32, #tpu.memory_space<vmem>>
    %38 = tpu.memref_slice %arg7[%c7_i32] : memref<8x!tpu.dma_semaphore, #tpu.memory_space<semaphore_mem>> -> memref<1x!tpu.dma_semaphore, #tpu.memory_space<semaphore_mem>>
    %39 = tpu.memref_squeeze %38 : memref<1x!tpu.dma_semaphore, #tpu.memory_space<semaphore_mem>> -> memref<!tpu.dma_semaphore, #tpu.memory_space<semaphore_mem>>
    tpu.enqueue_dma source(%36 : memref<1x56xf32, #tpu.memory_space<any>>) target(%37 : memref<1x56xf32, #tpu.memory_space<vmem>>) target_semaphore(%39 : memref<!tpu.dma_semaphore, #tpu.memory_space<semaphore_mem>>)
    %c0_i32_24 = arith.constant 0 : i32
    %c0_i32_25 = arith.constant 0 : i32
    %40 = tpu.memref_slice %arg2[%0, %c0_i32_25] : memref<64x56xf32, #tpu.memory_space<any>> -> memref<1x56xf32, #tpu.memory_space<any>>
    %c0_i32_26 = arith.constant 0 : i32
    %c0_i32_27 = arith.constant 0 : i32
    %41 = tpu.memref_slice %arg6[%c0_i32_26, %c0_i32_27] : memref<8x56xf32, #tpu.memory_space<vmem>> -> memref<1x56xf32, #tpu.memory_space<vmem>>
    %42 = tpu.memref_slice %arg7[%c0_i32_24] : memref<8x!tpu.dma_semaphore, #tpu.memory_space<semaphore_mem>> -> memref<1x!tpu.dma_semaphore, #tpu.memory_space<semaphore_mem>>
    %43 = tpu.memref_squeeze %42 : memref<1x!tpu.dma_semaphore, #tpu.memory_space<semaphore_mem>> -> memref<!tpu.dma_semaphore, #tpu.memory_space<semaphore_mem>>
    tpu.wait_dma2 semaphore(%43 : memref<!tpu.dma_semaphore, #tpu.memory_space<semaphore_mem>>) src(%40 : memref<1x56xf32, #tpu.memory_space<any>>) dst(%41 : memref<1x56xf32, #tpu.memory_space<vmem>>)
    %c1_i32_28 = arith.constant 1 : i32
    %c0_i32_29 = arith.constant 0 : i32
    %44 = tpu.memref_slice %arg2[%1, %c0_i32_29] : memref<64x56xf32, #tpu.memory_space<any>> -> memref<1x56xf32, #tpu.memory_space<any>>
    %c1_i32_30 = arith.constant 1 : i32
    %c0_i32_31 = arith.constant 0 : i32
    %45 = tpu.memref_slice %arg6[%c1_i32_30, %c0_i32_31] : memref<8x56xf32, #tpu.memory_space<vmem>> -> memref<1x56xf32, #tpu.memory_space<vmem>>
    %46 = tpu.memref_slice %arg7[%c1_i32_28] : memref<8x!tpu.dma_semaphore, #tpu.memory_space<semaphore_mem>> -> memref<1x!tpu.dma_semaphore, #tpu.memory_space<semaphore_mem>>
    %47 = tpu.memref_squeeze %46 : memref<1x!tpu.dma_semaphore, #tpu.memory_space<semaphore_mem>> -> memref<!tpu.dma_semaphore, #tpu.memory_space<semaphore_mem>>
    tpu.wait_dma2 semaphore(%47 : memref<!tpu.dma_semaphore, #tpu.memory_space<semaphore_mem>>) src(%44 : memref<1x56xf32, #tpu.memory_space<any>>) dst(%45 : memref<1x56xf32, #tpu.memory_space<vmem>>)
    %c2_i32_32 = arith.constant 2 : i32
    %c0_i32_33 = arith.constant 0 : i32
    %48 = tpu.memref_slice %arg2[%2, %c0_i32_33] : memref<64x56xf32, #tpu.memory_space<any>> -> memref<1x56xf32, #tpu.memory_space<any>>
    %c2_i32_34 = arith.constant 2 : i32
    %c0_i32_35 = arith.constant 0 : i32
    %49 = tpu.memref_slice %arg6[%c2_i32_34, %c0_i32_35] : memref<8x56xf32, #tpu.memory_space<vmem>> -> memref<1x56xf32, #tpu.memory_space<vmem>>
    %50 = tpu.memref_slice %arg7[%c2_i32_32] : memref<8x!tpu.dma_semaphore, #tpu.memory_space<semaphore_mem>> -> memref<1x!tpu.dma_semaphore, #tpu.memory_space<semaphore_mem>>
    %51 = tpu.memref_squeeze %50 : memref<1x!tpu.dma_semaphore, #tpu.memory_space<semaphore_mem>> -> memref<!tpu.dma_semaphore, #tpu.memory_space<semaphore_mem>>
    tpu.wait_dma2 semaphore(%51 : memref<!tpu.dma_semaphore, #tpu.memory_space<semaphore_mem>>) src(%48 : memref<1x56xf32, #tpu.memory_space<any>>) dst(%49 : memref<1x56xf32, #tpu.memory_space<vmem>>)
    %c3_i32_36 = arith.constant 3 : i32
    %c0_i32_37 = arith.constant 0 : i32
    %52 = tpu.memref_slice %arg2[%3, %c0_i32_37] : memref<64x56xf32, #tpu.memory_space<any>> -> memref<1x56xf32, #tpu.memory_space<any>>
    %c3_i32_38 = arith.constant 3 : i32
    %c0_i32_39 = arith.constant 0 : i32
    %53 = tpu.memref_slice %arg6[%c3_i32_38, %c0_i32_39] : memref<8x56xf32, #tpu.memory_space<vmem>> -> memref<1x56xf32, #tpu.memory_space<vmem>>
    %54 = tpu.memref_slice %arg7[%c3_i32_36] : memref<8x!tpu.dma_semaphore, #tpu.memory_space<semaphore_mem>> -> memref<1x!tpu.dma_semaphore, #tpu.memory_space<semaphore_mem>>
    %55 = tpu.memref_squeeze %54 : memref<1x!tpu.dma_semaphore, #tpu.memory_space<semaphore_mem>> -> memref<!tpu.dma_semaphore, #tpu.memory_space<semaphore_mem>>
    tpu.wait_dma2 semaphore(%55 : memref<!tpu.dma_semaphore, #tpu.memory_space<semaphore_mem>>) src(%52 : memref<1x56xf32, #tpu.memory_space<any>>) dst(%53 : memref<1x56xf32, #tpu.memory_space<vmem>>)
    %c4_i32_40 = arith.constant 4 : i32
    %c0_i32_41 = arith.constant 0 : i32
    %56 = tpu.memref_slice %arg2[%4, %c0_i32_41] : memref<64x56xf32, #tpu.memory_space<any>> -> memref<1x56xf32, #tpu.memory_space<any>>
    %c4_i32_42 = arith.constant 4 : i32
    %c0_i32_43 = arith.constant 0 : i32
    %57 = tpu.memref_slice %arg6[%c4_i32_42, %c0_i32_43] : memref<8x56xf32, #tpu.memory_space<vmem>> -> memref<1x56xf32, #tpu.memory_space<vmem>>
    %58 = tpu.memref_slice %arg7[%c4_i32_40] : memref<8x!tpu.dma_semaphore, #tpu.memory_space<semaphore_mem>> -> memref<1x!tpu.dma_semaphore, #tpu.memory_space<semaphore_mem>>
    %59 = tpu.memref_squeeze %58 : memref<1x!tpu.dma_semaphore, #tpu.memory_space<semaphore_mem>> -> memref<!tpu.dma_semaphore, #tpu.memory_space<semaphore_mem>>
    tpu.wait_dma2 semaphore(%59 : memref<!tpu.dma_semaphore, #tpu.memory_space<semaphore_mem>>) src(%56 : memref<1x56xf32, #tpu.memory_space<any>>) dst(%57 : memref<1x56xf32, #tpu.memory_space<vmem>>)
    %c5_i32_44 = arith.constant 5 : i32
    %c0_i32_45 = arith.constant 0 : i32
    %60 = tpu.memref_slice %arg2[%5, %c0_i32_45] : memref<64x56xf32, #tpu.memory_space<any>> -> memref<1x56xf32, #tpu.memory_space<any>>
    %c5_i32_46 = arith.constant 5 : i32
    %c0_i32_47 = arith.constant 0 : i32
    %61 = tpu.memref_slice %arg6[%c5_i32_46, %c0_i32_47] : memref<8x56xf32, #tpu.memory_space<vmem>> -> memref<1x56xf32, #tpu.memory_space<vmem>>
    %62 = tpu.memref_slice %arg7[%c5_i32_44] : memref<8x!tpu.dma_semaphore, #tpu.memory_space<semaphore_mem>> -> memref<1x!tpu.dma_semaphore, #tpu.memory_space<semaphore_mem>>
    %63 = tpu.memref_squeeze %62 : memref<1x!tpu.dma_semaphore, #tpu.memory_space<semaphore_mem>> -> memref<!tpu.dma_semaphore, #tpu.memory_space<semaphore_mem>>
    tpu.wait_dma2 semaphore(%63 : memref<!tpu.dma_semaphore, #tpu.memory_space<semaphore_mem>>) src(%60 : memref<1x56xf32, #tpu.memory_space<any>>) dst(%61 : memref<1x56xf32, #tpu.memory_space<vmem>>)
    %c6_i32_48 = arith.constant 6 : i32
    %c0_i32_49 = arith.constant 0 : i32
    %64 = tpu.memref_slice %arg2[%6, %c0_i32_49] : memref<64x56xf32, #tpu.memory_space<any>> -> memref<1x56xf32, #tpu.memory_space<any>>
    %c6_i32_50 = arith.constant 6 : i32
    %c0_i32_51 = arith.constant 0 : i32
    %65 = tpu.memref_slice %arg6[%c6_i32_50, %c0_i32_51] : memref<8x56xf32, #tpu.memory_space<vmem>> -> memref<1x56xf32, #tpu.memory_space<vmem>>
    %66 = tpu.memref_slice %arg7[%c6_i32_48] : memref<8x!tpu.dma_semaphore, #tpu.memory_space<semaphore_mem>> -> memref<1x!tpu.dma_semaphore, #tpu.memory_space<semaphore_mem>>
    %67 = tpu.memref_squeeze %66 : memref<1x!tpu.dma_semaphore, #tpu.memory_space<semaphore_mem>> -> memref<!tpu.dma_semaphore, #tpu.memory_space<semaphore_mem>>
    tpu.wait_dma2 semaphore(%67 : memref<!tpu.dma_semaphore, #tpu.memory_space<semaphore_mem>>) src(%64 : memref<1x56xf32, #tpu.memory_space<any>>) dst(%65 : memref<1x56xf32, #tpu.memory_space<vmem>>)
    %c7_i32_52 = arith.constant 7 : i32
    %c0_i32_53 = arith.constant 0 : i32
    %68 = tpu.memref_slice %arg2[%7, %c0_i32_53] : memref<64x56xf32, #tpu.memory_space<any>> -> memref<1x56xf32, #tpu.memory_space<any>>
    %c7_i32_54 = arith.constant 7 : i32
    %c0_i32_55 = arith.constant 0 : i32
    %69 = tpu.memref_slice %arg6[%c7_i32_54, %c0_i32_55] : memref<8x56xf32, #tpu.memory_space<vmem>> -> memref<1x56xf32, #tpu.memory_space<vmem>>
    %70 = tpu.memref_slice %arg7[%c7_i32_52] : memref<8x!tpu.dma_semaphore, #tpu.memory_space<semaphore_mem>> -> memref<1x!tpu.dma_semaphore, #tpu.memory_space<semaphore_mem>>
    %71 = tpu.memref_squeeze %70 : memref<1x!tpu.dma_semaphore, #tpu.memory_space<semaphore_mem>> -> memref<!tpu.dma_semaphore, #tpu.memory_space<semaphore_mem>>
    tpu.wait_dma2 semaphore(%71 : memref<!tpu.dma_semaphore, #tpu.memory_space<semaphore_mem>>) src(%68 : memref<1x56xf32, #tpu.memory_space<any>>) dst(%69 : memref<1x56xf32, #tpu.memory_space<vmem>>)
    %c0_56 = arith.constant 0 : index
    %c0_57 = arith.constant 0 : index
    %72 = vector.load %arg6[%c0_56, %c0_57] : memref<8x56xf32, #tpu.memory_space<vmem>>, vector<8x56xf32>
    %c0_58 = arith.constant 0 : index
    %c0_59 = arith.constant 0 : index
    %73 = vector.load %arg3[%c0_58, %c0_59] : memref<56x128xf32, #tpu.memory_space<vmem>>, vector<56x128xf32>
    %cst = arith.constant dense<0.000000e+00> : vector<8x128xf32>
    %74 = tpu.matmul %72, %73, %cst {dimension_numbers = #tpu.dot_dimension_numbers<[1], [0], [0], [1], [0, 0, 1, 1], [], []>} : vector<8x56xf32>, vector<56x128xf32>, vector<8x128xf32> -> vector<8x128xf32>
    %c0_60 = arith.constant 0 : index
    %c0_61 = arith.constant 0 : index
    %75 = vector.load %arg4[%c0_60, %c0_61] : memref<1x128xf32, #tpu.memory_space<vmem>>, vector<1x128xf32>
    %76 = vector.broadcast %75 : vector<1x128xf32> to vector<8x128xf32>
    %77 = arith.addf %74, %76 : vector<8x128xf32>
    %78 = tpu.iota {dimensions = array<i32: 0>} : vector<8x128xi32>
    %c4_i32_62 = arith.constant 4 : i32
    %79 = vector.broadcast %c4_i32_62 : i32 to vector<8x128xi32>
    %80 = arith.cmpi slt, %78, %79 : vector<8x128xi32>
    %c128_i32 = arith.constant 128 : i32
    %81 = arith.muli %arg0, %c128_i32 : i32
    %82 = tpu.iota {dimensions = array<i32: 1>} : vector<8x128xi32>
    %83 = vector.broadcast %81 : i32 to vector<8x128xi32>
    %84 = arith.addi %83, %82 : vector<8x128xi32>
    %c64_i32 = arith.constant 64 : i32
    %85 = vector.broadcast %c64_i32 : i32 to vector<8x128xi32>
    %86 = arith.cmpi slt, %84, %85 : vector<8x128xi32>
    %87 = arith.andi %80, %86 : vector<8x128xi1>
    %cst_63 = arith.constant -1.000000e+30 : f32
    %88 = vector.broadcast %cst_63 : f32 to vector<8x128xf32>
    %89 = arith.select %87, %77, %88 : vector<8x128xi1>, vector<8x128xf32>
    %cst_64 = arith.constant dense<0xFF800000> : vector<8xf32>
    %90 = vector.multi_reduction <maximumf>, %89, %cst_64 [1] : vector<8x128xf32> to vector<8xf32>
    %91 = vector.shape_cast %90 : vector<8xf32> to vector<8x1xf32>
    %cst_65 = arith.constant dense<0xFF800000> : vector<1xf32>
    %92 = vector.multi_reduction <maximumf>, %91, %cst_65 [0] : vector<8x1xf32> to vector<1xf32>
    %93 = vector.shape_cast %92 : vector<1xf32> to vector<1x1xf32>
    %94 = vector.broadcast %93 : vector<1x1xf32> to vector<8x128xf32>
    %95 = arith.subf %89, %94 : vector<8x128xf32>
    %96 = math.exp %95 : vector<8x128xf32>
    %cst_66 = arith.constant dense<0.000000e+00> : vector<8xf32>
    %97 = vector.multi_reduction <add>, %96, %cst_66 [1] : vector<8x128xf32> to vector<8xf32>
    %98 = vector.shape_cast %97 : vector<8xf32> to vector<8x1xf32>
    %cst_67 = arith.constant dense<0.000000e+00> : vector<1xf32>
    %99 = vector.multi_reduction <add>, %98, %cst_67 [0] : vector<8x1xf32> to vector<1xf32>
    %100 = vector.shape_cast %99 : vector<1xf32> to vector<1x1xf32>
    %101 = math.log %100 : vector<1x1xf32>
    %102 = arith.addf %93, %101 : vector<1x1xf32>
    %103 = vector.broadcast %102 : vector<1x1xf32> to vector<8x128xf32>
    %104 = arith.subf %77, %103 : vector<8x128xf32>
    %c0_68 = arith.constant 0 : index
    %c0_69 = arith.constant 0 : index
    %c0_70 = arith.constant 0 : index
    %105 = vector.load %arg5[%c0_68, %c0_69, %c0_70] : memref<1x8x128xf32, #tpu.memory_space<vmem>>, vector<1x8x128xf32>
    %106 = vector.shape_cast %105 : vector<1x8x128xf32> to vector<8x128xf32>
    %107 = vector.shape_cast %104 : vector<8x128xf32> to vector<1x8x128xf32>
    tpu.vector_store %arg5[%c0_68, %c0_69, %c0_70], %107 {strides = array<i32>} : memref<1x8x128xf32, #tpu.memory_space<vmem>>, vector<1x8x128xf32>,
    return
  }
  func.func @transform_1(%arg0: i32, %arg1: memref<8xi32, #tpu.memory_space<smem>>) -> (i32, i32) {
    %c0_i32 = arith.constant 0 : i32
    %c0_i32_0 = arith.constant 0 : i32
    return %c0_i32, %arg0 : i32, i32
  }
  func.func @transform_2(%arg0: i32, %arg1: memref<8xi32, #tpu.memory_space<smem>>) -> (i32, i32) {
    %c0_i32 = arith.constant 0 : i32
    %c0_i32_0 = arith.constant 0 : i32
    return %c0_i32, %arg0 : i32, i32
  }
  func.func @transform_3(%arg0: i32, %arg1: memref<8xi32, #tpu.memory_space<smem>>) -> (i32, i32, i32) {
    %c0_i32 = arith.constant 0 : i32
    %c0_i32_0 = arith.constant 0 : i32
    %c0_i32_1 = arith.constant 0 : i32
    %c0_i32_2 = arith.constant 0 : i32
    return %c0_i32, %c0_i32_0, %c0_i32_1 : i32, i32, i32
  }
}

</mosaic_0001>

<llo_original>
// kernel: tpu_custom_call.1
$region0: #{tpu_custom_call.1}
  #allocation0 [shape = 'u32[]', space=smem, size = 0x4, offset = 0x4, fixed_abs, tag = 'smem constant byte address 0x4 - core index']
  #allocation1 [shape = 'u32[72,128]{1,0:T(1,128)}', space=vmem, size = 0x9000, scoped, tag = 'internal scratch']
  #allocation2 [shape = 'f32[8,56]{1,0:T(8,128)}', space=vmem, size = 0x1000, scoped, tag = 'scratch operand']
  #allocation3 [shape = 's32[8]{0}', space=sflag, size = 0x20, scoped, tag = 'scratch operand']
  #allocation4 [shape = 'f32[1,1]{1,0:T(1,128)}', space=vmem, size = 0x200, scoped, tag = 'scratch operand']
  #allocation5 [shape = 'f32[1,1]{1,0:T(1,128)}', space=vmem, size = 0x200, scoped, tag = 'scratch operand']
  #allocation6 [shape = 's32[1]{0}', space=sflag, size = 0x4, scoped, tag = 'scoped memory for tpu_custom_call.1']
  #allocation7 [shape = 'u8[512]{0}', space=smem, size = 0x200, scoped, tag = 'prefetched SMEM operand 0']
  #allocation10 [shape = 's32[]', space=sflag, size = 0x4, offset = 0, fixed_abs, tag = 'sflag constant byte address 0x0 - dummy sync flag']
  #allocation11 [shape = 's32[]', space=sflag, size = 0x4, offset = 0, fixed_abs, tag = 'sflag constant byte address 0x0 - dummy sync flag']
  #allocation12 [shape = 's32[]', space=sflag, size = 0x4, offset = 0, fixed_abs, tag = 'sflag constant byte address 0x0 - dummy sync flag']
  #allocation13 [shape = 's32[]', space=sflag, size = 0x4, offset = 0, fixed_abs, tag = 'sflag constant byte address 0x0 - dummy sync flag']
  #allocation14 [shape = 's32[]', space=sflag, size = 0x4, offset = 0, fixed_abs, tag = 'sflag constant byte address 0x0 - dummy sync flag']
  #allocation15 [shape = 's32[]', space=sflag, size = 0x4, offset = 0, fixed_abs, tag = 'sflag constant byte address 0x0 - dummy sync flag']
  #allocation16 [shape = 's32[]', space=sflag, size = 0x4, offset = 0, fixed_abs, tag = 'sflag constant byte address 0x0 - dummy sync flag']
  #allocation17 [shape = 's32[]', space=sflag, size = 0x4, offset = 0, fixed_abs, tag = 'sflag constant byte address 0x0 - dummy sync flag']
  %s0 = inlined_call_operand.vmem [shape: s32[8], index: 0, kind: input, shape index: {}]
  %s1 = inlined_call_operand.vmem [shape: f32[64,56], index: 1, kind: input, shape index: {}]
  %s2 = inlined_call_operand.vmem [shape: f32[56,128], index: 2, kind: input, shape index: {}]
  %s3 = inlined_call_operand.vmem [shape: f32[1,128], index: 3, kind: input, shape index: {}]
  %s4 = inlined_call_operand.hbm [shape: f32[1,8,128], index: 4, kind: output, shape index: {}]
  %s5 = sld [smem:[#allocation0]]
  $region258: #{tpu_custom_call.1} parent=0
    _
  %s7 = ssub.s32 1, %s5
  %s8 = scalar_select 0, %s7, %s5
  %s10 = sshll.u32 %s0, 4
  %s11 = int_to_ptr.vmem [resolvable:$true] %s10
  %13 = dma.vmem_to_smem %s11, 16, [#allocation7], [#allocation6]
  %15 = dma.done [#allocation6], 16
  %16 = sfence
  $region1: #{tpu_custom_call.1} parent=0
    #allocation8 [shape = 'u8[4096]{0}', space=vmem, size = 0x1000, scoped, tag = 'output window, operand 0, single buffered']
    #allocation9 [shape = 's32[1]{0}', space=sflag, size = 0x4, scoped, tag = 'scoped memory for tpu_custom_call.1']
    %17 = vsyncpa [#allocation9], 0
    // Predicated region
    $region2: #{tpu_custom_call.1} parent=1 // pred_check
      _
    $region3: #{tpu_custom_call.1} parent=1 // pred_check_branch
      %19 = sbr.rel (0) target = $region5
    $region4: #{tpu_custom_call.1} parent=1 // pred_region
      _
    $region5: #{tpu_custom_call.1} parent=1 // pred_fallthru
      _
    // Predicated region
    $region6: #{tpu_custom_call.1} parent=1 // pred_check
      _
    $region7: #{tpu_custom_call.1} parent=1 // pred_check_branch
      %21 = sbr.rel (0) target = $region9
    $region8: #{tpu_custom_call.1} parent=1 // pred_region
      _
    $region9: #{tpu_custom_call.1} parent=1 // pred_fallthru
      _
    %s22 = sld [smem:[#allocation7]]
    %s23 = sld [smem:[#allocation7 + $0x1]]
    %s24 = sld [smem:[#allocation7 + $0x2]]
    %s25 = sld [smem:[#allocation7 + $0x3]]
    %s26 = sld [smem:[#allocation7 + $0x4]]
    %s27 = sld [smem:[#allocation7 + $0x5]]
    %s28 = sld [smem:[#allocation7 + $0x6]]
    %s29 = sld [smem:[#allocation7 + $0x7]]
    %s30 = scalar_lea.vmem %s1, %s22
    // Predicated region
    $region10: #{tpu_custom_call.1} parent=1 // pred_check
      _
    $region11: #{tpu_custom_call.1} parent=1 // pred_check_branch
      %32 = sbr.rel target = $region13
    $region12: #{tpu_custom_call.1} parent=1 // pred_region
      // Predicated region
      $region25: #{tpu_custom_call.1} parent=12 // pred_check
        _
      $region26: #{tpu_custom_call.1} parent=12 // pred_check_branch
        %48 = sbr.rel (0) target = $region28
      $region27: #{tpu_custom_call.1} parent=12 // pred_region
        %s50 = ssub.s32 2, 1
        loop: start=0, step=1, limit=1
        $region29: #{tpu_custom_call.1} parent=27 // loop_pre_header
          _
        $region30: #{tpu_custom_call.1} parent=27 // loop_header
          %s52 = sphi 0, %s56
          %p53 = scmp.ge.s32.totalorder %s52, 1
          %s57 = sphi %s30, %s30
          %s58 = sphi [#allocation2], [#allocation2]
        $region31: #{tpu_custom_call.1} parent=27 // loop_header_branch
          %55 = sbr.rel (%p53) target = $region35
        $region32: #{tpu_custom_call.1} parent=27 // loop_body
          %v59 = vld [vmem:[%s57] sm:%s50]
          %60 = vst [vmem:[%s58] sm:%s50] %v59
        $region33: #{tpu_custom_call.1} parent=27 // loop_footer
          %s56 = sadd.s32 1, %s52
        $region34: #{tpu_custom_call.1} parent=27 // loop_footer_branch
          %51 = sbr.rel target = $region30
        $region35: #{tpu_custom_call.1} parent=27 // loop_exit
          _
      $region28: #{tpu_custom_call.1} parent=12 // pred_fallthru
        _
    $region13: #{tpu_custom_call.1} parent=1 // pred_fallthru
      _
    // Predicated region
    $region14: #{tpu_custom_call.1} parent=1 // pred_check
      _
    $region15: #{tpu_custom_call.1} parent=1 // pred_check_branch
      %34 = sbr.rel (0) target = $region17
    $region16: #{tpu_custom_call.1} parent=1 // pred_region
      %s36 = ssub.s32 2, 1
      loop: start=0, step=1, limit=1
      $region18: #{tpu_custom_call.1} parent=16 // loop_pre_header
        _
      $region19: #{tpu_custom_call.1} parent=16 // loop_header
        %s38 = sphi 0, %s42
        %p39 = scmp.ge.s32.totalorder %s38, 1
        %s43 = sphi %s30, %s30
        %s44 = sphi [#allocation2], [#allocation2]
      $region20: #{tpu_custom_call.1} parent=16 // loop_header_branch
        %41 = sbr.rel (%p39) target = $region24
      $region21: #{tpu_custom_call.1} parent=16 // loop_body
        %v45 = vld [vmem:[%s43] sm:%s36]
        %46 = vst [vmem:[%s44] sm:%s36] %v45
      $region22: #{tpu_custom_call.1} parent=16 // loop_footer
        %s42 = sadd.s32 1, %s38
      $region23: #{tpu_custom_call.1} parent=16 // loop_footer_branch
        %37 = sbr.rel target = $region19
      $region24: #{tpu_custom_call.1} parent=16 // loop_exit
        _
    $region17: #{tpu_custom_call.1} parent=1 // pred_fallthru
      _
    // Predicated region
    $region36: #{tpu_custom_call.1} parent=1 // pred_check
      _
    $region37: #{tpu_custom_call.1} parent=1 // pred_check_branch
      %63 = sbr.rel (0) target = $region39
    $region38: #{tpu_custom_call.1} parent=1 // pred_region
      %64 = vsyncadd [#allocation3], 16
    $region39: #{tpu_custom_call.1} parent=1 // pred_fallthru
      _
    %s65 = scalar_lea.vmem %s1, %s23
    %s66 = scalar_lea.vmem [#allocation2], 1
    %s67 = scalar_lea.sflag [#allocation3], 1
    // Predicated region
    $region40: #{tpu_custom_call.1} parent=1 // pred_check
      _
    $region41: #{tpu_custom_call.1} parent=1 // pred_check_branch
      %69 = sbr.rel target = $region43
    $region42: #{tpu_custom_call.1} parent=1 // pred_region
      // Predicated region
      $region55: #{tpu_custom_call.1} parent=42 // pred_check
        _
      $region56: #{tpu_custom_call.1} parent=42 // pred_check_branch
        %85 = sbr.rel (0) target = $region58
      $region57: #{tpu_custom_call.1} parent=42 // pred_region
        %s87 = ssub.s32 2, 1
        loop: start=0, step=1, limit=1
        $region59: #{tpu_custom_call.1} parent=57 // loop_pre_header
          _
        $region60: #{tpu_custom_call.1} parent=57 // loop_header
          %s89 = sphi 0, %s93
          %p90 = scmp.ge.s32.totalorder %s89, 1
          %s94 = sphi %s65, %s65
          %s95 = sphi %s66, %s66
        $region61: #{tpu_custom_call.1} parent=57 // loop_header_branch
          %92 = sbr.rel (%p90) target = $region65
        $region62: #{tpu_custom_call.1} parent=57 // loop_body
          %v96 = vld [vmem:[%s94] sm:%s87]
          %97 = vst [vmem:[%s95] sm:%s87] %v96
        $region63: #{tpu_custom_call.1} parent=57 // loop_footer
          %s93 = sadd.s32 1, %s89
        $region64: #{tpu_custom_call.1} parent=57 // loop_footer_branch
          %88 = sbr.rel target = $region60
        $region65: #{tpu_custom_call.1} parent=57 // loop_exit
          _
      $region58: #{tpu_custom_call.1} parent=42 // pred_fallthru
        _
    $region43: #{tpu_custom_call.1} parent=1 // pred_fallthru
      _
    // Predicated region
    $region44: #{tpu_custom_call.1} parent=1 // pred_check
      _
    $region45: #{tpu_custom_call.1} parent=1 // pred_check_branch
      %71 = sbr.rel (0) target = $region47
    $region46: #{tpu_custom_call.1} parent=1 // pred_region
      %s73 = ssub.s32 2, 1
      loop: start=0, step=1, limit=1
      $region48: #{tpu_custom_call.1} parent=46 // loop_pre_header
        _
      $region49: #{tpu_custom_call.1} parent=46 // loop_header
        %s75 = sphi 0, %s79
        %p76 = scmp.ge.s32.totalorder %s75, 1
        %s80 = sphi %s65, %s65
        %s81 = sphi %s66, %s66
      $region50: #{tpu_custom_call.1} parent=46 // loop_header_branch
        %78 = sbr.rel (%p76) target = $region54
      $region51: #{tpu_custom_call.1} parent=46 // loop_body
        %v82 = vld [vmem:[%s80] sm:%s73]
        %83 = vst [vmem:[%s81] sm:%s73] %v82
      $region52: #{tpu_custom_call.1} parent=46 // loop_footer
        %s79 = sadd.s32 1, %s75
      $region53: #{tpu_custom_call.1} parent=46 // loop_footer_branch
        %74 = sbr.rel target = $region49
      $region54: #{tpu_custom_call.1} parent=46 // loop_exit
        _
    $region47: #{tpu_custom_call.1} parent=1 // pred_fallthru
      _
    // Predicated region
    $region66: #{tpu_custom_call.1} parent=1 // pred_check
      _
    $region67: #{tpu_custom_call.1} parent=1 // pred_check_branch
      %100 = sbr.rel (0) target = $region69
    $region68: #{tpu_custom_call.1} parent=1 // pred_region
      %101 = vsyncadd %s67, 16
    $region69: #{tpu_custom_call.1} parent=1 // pred_fallthru
      _
    %s102 = scalar_lea.vmem %s1, %s24
    %s103 = scalar_lea.vmem [#allocation2], 2
    %s104 = scalar_lea.sflag [#allocation3], 2
    // Predicated region
    $region70: #{tpu_custom_call.1} parent=1 // pred_check
      _
    $region71: #{tpu_custom_call.1} parent=1 // pred_check_branch
      %106 = sbr.rel target = $region73
    $region72: #{tpu_custom_call.1} parent=1 // pred_region
      // Predicated region
      $region85: #{tpu_custom_call.1} parent=72 // pred_check
        _
      $region86: #{tpu_custom_call.1} parent=72 // pred_check_branch
        %122 = sbr.rel (0) target = $region88
      $region87: #{tpu_custom_call.1} parent=72 // pred_region
        %s124 = ssub.s32 2, 1
        loop: start=0, step=1, limit=1
        $region89: #{tpu_custom_call.1} parent=87 // loop_pre_header
          _
        $region90: #{tpu_custom_call.1} parent=87 // loop_header
          %s126 = sphi 0, %s130
          %p127 = scmp.ge.s32.totalorder %s126, 1
          %s131 = sphi %s102, %s102
          %s132 = sphi %s103, %s103
        $region91: #{tpu_custom_call.1} parent=87 // loop_header_branch
          %129 = sbr.rel (%p127) target = $region95
        $region92: #{tpu_custom_call.1} parent=87 // loop_body
          %v133 = vld [vmem:[%s131] sm:%s124]
          %134 = vst [vmem:[%s132] sm:%s124] %v133
        $region93: #{tpu_custom_call.1} parent=87 // loop_footer
          %s130 = sadd.s32 1, %s126
        $region94: #{tpu_custom_call.1} parent=87 // loop_footer_branch
          %125 = sbr.rel target = $region90
        $region95: #{tpu_custom_call.1} parent=87 // loop_exit
          _
      $region88: #{tpu_custom_call.1} parent=72 // pred_fallthru
        _
    $region73: #{tpu_custom_call.1} parent=1 // pred_fallthru
      _
    // Predicated region
    $region74: #{tpu_custom_call.1} parent=1 // pred_check
      _
    $region75: #{tpu_custom_call.1} parent=1 // pred_check_branch
      %108 = sbr.rel (0) target = $region77
    $region76: #{tpu_custom_call.1} parent=1 // pred_region
      %s110 = ssub.s32 2, 1
      loop: start=0, step=1, limit=1
      $region78: #{tpu_custom_call.1} parent=76 // loop_pre_header
        _
      $region79: #{tpu_custom_call.1} parent=76 // loop_header
        %s112 = sphi 0, %s116
        %p113 = scmp.ge.s32.totalorder %s112, 1
        %s117 = sphi %s102, %s102
        %s118 = sphi %s103, %s103
      $region80: #{tpu_custom_call.1} parent=76 // loop_header_branch
        %115 = sbr.rel (%p113) target = $region84
      $region81: #{tpu_custom_call.1} parent=76 // loop_body
        %v119 = vld [vmem:[%s117] sm:%s110]
        %120 = vst [vmem:[%s118] sm:%s110] %v119
      $region82: #{tpu_custom_call.1} parent=76 // loop_footer
        %s116 = sadd.s32 1, %s112
      $region83: #{tpu_custom_call.1} parent=76 // loop_footer_branch
        %111 = sbr.rel target = $region79
      $region84: #{tpu_custom_call.1} parent=76 // loop_exit
        _
    $region77: #{tpu_custom_call.1} parent=1 // pred_fallthru
      _
    // Predicated region
    $region96: #{tpu_custom_call.1} parent=1 // pred_check
      _
    $region97: #{tpu_custom_call.1} parent=1 // pred_check_branch
      %137 = sbr.rel (0) target = $region99
    $region98: #{tpu_custom_call.1} parent=1 // pred_region
      %138 = vsyncadd %s104, 16
    $region99: #{tpu_custom_call.1} parent=1 // pred_fallthru
      _
    %s139 = scalar_lea.vmem %s1, %s25
    %s140 = scalar_lea.vmem [#allocation2], 3
    %s141 = scalar_lea.sflag [#allocation3], 3
    // Predicated region
    $region100: #{tpu_custom_call.1} parent=1 // pred_check
      _
    $region101: #{tpu_custom_call.1} parent=1 // pred_check_branch
      %143 = sbr.rel target = $region103
    $region102: #{tpu_custom_call.1} parent=1 // pred_region
      // Predicated region
      $region115: #{tpu_custom_call.1} parent=102 // pred_check
        _
      $region116: #{tpu_custom_call.1} parent=102 // pred_check_branch
        %159 = sbr.rel (0) target = $region118
      $region117: #{tpu_custom_call.1} parent=102 // pred_region
        %s161 = ssub.s32 2, 1
        loop: start=0, step=1, limit=1
        $region119: #{tpu_custom_call.1} parent=117 // loop_pre_header
          _
        $region120: #{tpu_custom_call.1} parent=117 // loop_header
          %s163 = sphi 0, %s167
          %p164 = scmp.ge.s32.totalorder %s163, 1
          %s168 = sphi %s139, %s139
          %s169 = sphi %s140, %s140
        $region121: #{tpu_custom_call.1} parent=117 // loop_header_branch
          %166 = sbr.rel (%p164) target = $region125
        $region122: #{tpu_custom_call.1} parent=117 // loop_body
          %v170 = vld [vmem:[%s168] sm:%s161]
          %171 = vst [vmem:[%s169] sm:%s161] %v170
        $region123: #{tpu_custom_call.1} parent=117 // loop_footer
          %s167 = sadd.s32 1, %s163
        $region124: #{tpu_custom_call.1} parent=117 // loop_footer_branch
          %162 = sbr.rel target = $region120
        $region125: #{tpu_custom_call.1} parent=117 // loop_exit
          _
      $region118: #{tpu_custom_call.1} parent=102 // pred_fallthru
        _
    $region103: #{tpu_custom_call.1} parent=1 // pred_fallthru
      _
    // Predicated region
    $region104: #{tpu_custom_call.1} parent=1 // pred_check
      _
    $region105: #{tpu_custom_call.1} parent=1 // pred_check_branch
      %145 = sbr.rel (0) target = $region107
    $region106: #{tpu_custom_call.1} parent=1 // pred_region
      %s147 = ssub.s32 2, 1
      loop: start=0, step=1, limit=1
      $region108: #{tpu_custom_call.1} parent=106 // loop_pre_header
        _
      $region109: #{tpu_custom_call.1} parent=106 // loop_header
        %s149 = sphi 0, %s153
        %p150 = scmp.ge.s32.totalorder %s149, 1
        %s154 = sphi %s139, %s139
        %s155 = sphi %s140, %s140
      $region110: #{tpu_custom_call.1} parent=106 // loop_header_branch
        %152 = sbr.rel (%p150) target = $region114
      $region111: #{tpu_custom_call.1} parent=106 // loop_body
        %v156 = vld [vmem:[%s154] sm:%s147]
        %157 = vst [vmem:[%s155] sm:%s147] %v156
      $region112: #{tpu_custom_call.1} parent=106 // loop_footer
        %s153 = sadd.s32 1, %s149
      $region113: #{tpu_custom_call.1} parent=106 // loop_footer_branch
        %148 = sbr.rel target = $region109
      $region114: #{tpu_custom_call.1} parent=106 // loop_exit
        _
    $region107: #{tpu_custom_call.1} parent=1 // pred_fallthru
      _
    // Predicated region
    $region126: #{tpu_custom_call.1} parent=1 // pred_check
      _
    $region127: #{tpu_custom_call.1} parent=1 // pred_check_branch
      %174 = sbr.rel (0) target = $region129
    $region128: #{tpu_custom_call.1} parent=1 // pred_region
      %175 = vsyncadd %s141, 16
    $region129: #{tpu_custom_call.1} parent=1 // pred_fallthru
      _
    %s176 = scalar_lea.vmem %s1, %s26
    %s177 = scalar_lea.vmem [#allocation2], 4
    %s178 = scalar_lea.sflag [#allocation3], 4
    // Predicated region
    $region130: #{tpu_custom_call.1} parent=1 // pred_check
      _
    $region131: #{tpu_custom_call.1} parent=1 // pred_check_branch
      %180 = sbr.rel target = $region133
    $region132: #{tpu_custom_call.1} parent=1 // pred_region
      // Predicated region
      $region145: #{tpu_custom_call.1} parent=132 // pred_check
        _
      $region146: #{tpu_custom_call.1} parent=132 // pred_check_branch
        %196 = sbr.rel (0) target = $region148
      $region147: #{tpu_custom_call.1} parent=132 // pred_region
        %s198 = ssub.s32 2, 1
        loop: start=0, step=1, limit=1
        $region149: #{tpu_custom_call.1} parent=147 // loop_pre_header
          _
        $region150: #{tpu_custom_call.1} parent=147 // loop_header
          %s200 = sphi 0, %s204
          %p201 = scmp.ge.s32.totalorder %s200, 1
          %s205 = sphi %s176, %s176
          %s206 = sphi %s177, %s177
        $region151: #{tpu_custom_call.1} parent=147 // loop_header_branch
          %203 = sbr.rel (%p201) target = $region155
        $region152: #{tpu_custom_call.1} parent=147 // loop_body
          %v207 = vld [vmem:[%s205] sm:%s198]
          %208 = vst [vmem:[%s206] sm:%s198] %v207
        $region153: #{tpu_custom_call.1} parent=147 // loop_footer
          %s204 = sadd.s32 1, %s200
        $region154: #{tpu_custom_call.1} parent=147 // loop_footer_branch
          %199 = sbr.rel target = $region150
        $region155: #{tpu_custom_call.1} parent=147 // loop_exit
          _
      $region148: #{tpu_custom_call.1} parent=132 // pred_fallthru
        _
    $region133: #{tpu_custom_call.1} parent=1 // pred_fallthru
      _
    // Predicated region
    $region134: #{tpu_custom_call.1} parent=1 // pred_check
      _
    $region135: #{tpu_custom_call.1} parent=1 // pred_check_branch
      %182 = sbr.rel (0) target = $region137
    $region136: #{tpu_custom_call.1} parent=1 // pred_region
      %s184 = ssub.s32 2, 1
      loop: start=0, step=1, limit=1
      $region138: #{tpu_custom_call.1} parent=136 // loop_pre_header
        _
      $region139: #{tpu_custom_call.1} parent=136 // loop_header
        %s186 = sphi 0, %s190
        %p187 = scmp.ge.s32.totalorder %s186, 1
        %s191 = sphi %s176, %s176
        %s192 = sphi %s177, %s177
      $region140: #{tpu_custom_call.1} parent=136 // loop_header_branch
        %189 = sbr.rel (%p187) target = $region144
      $region141: #{tpu_custom_call.1} parent=136 // loop_body
        %v193 = vld [vmem:[%s191] sm:%s184]
        %194 = vst [vmem:[%s192] sm:%s184] %v193
      $region142: #{tpu_custom_call.1} parent=136 // loop_footer
        %s190 = sadd.s32 1, %s186
      $region143: #{tpu_custom_call.1} parent=136 // loop_footer_branch
        %185 = sbr.rel target = $region139
      $region144: #{tpu_custom_call.1} parent=136 // loop_exit
        _
    $region137: #{tpu_custom_call.1} parent=1 // pred_fallthru
      _
    // Predicated region
    $region156: #{tpu_custom_call.1} parent=1 // pred_check
      _
    $region157: #{tpu_custom_call.1} parent=1 // pred_check_branch
      %211 = sbr.rel (0) target = $region159
    $region158: #{tpu_custom_call.1} parent=1 // pred_region
      %212 = vsyncadd %s178, 16
    $region159: #{tpu_custom_call.1} parent=1 // pred_fallthru
      _
    %s213 = scalar_lea.vmem %s1, %s27
    %s214 = scalar_lea.vmem [#allocation2], 5
    %s215 = scalar_lea.sflag [#allocation3], 5
    // Predicated region
    $region160: #{tpu_custom_call.1} parent=1 // pred_check
      _
    $region161: #{tpu_custom_call.1} parent=1 // pred_check_branch
      %217 = sbr.rel target = $region163
    $region162: #{tpu_custom_call.1} parent=1 // pred_region
      // Predicated region
      $region175: #{tpu_custom_call.1} parent=162 // pred_check
        _
      $region176: #{tpu_custom_call.1} parent=162 // pred_check_branch
        %233 = sbr.rel (0) target = $region178
      $region177: #{tpu_custom_call.1} parent=162 // pred_region
        %s235 = ssub.s32 2, 1
        loop: start=0, step=1, limit=1
        $region179: #{tpu_custom_call.1} parent=177 // loop_pre_header
          _
        $region180: #{tpu_custom_call.1} parent=177 // loop_header
          %s237 = sphi 0, %s241
          %p238 = scmp.ge.s32.totalorder %s237, 1
          %s242 = sphi %s213, %s213
          %s243 = sphi %s214, %s214
        $region181: #{tpu_custom_call.1} parent=177 // loop_header_branch
          %240 = sbr.rel (%p238) target = $region185
        $region182: #{tpu_custom_call.1} parent=177 // loop_body
          %v244 = vld [vmem:[%s242] sm:%s235]
          %245 = vst [vmem:[%s243] sm:%s235] %v244
        $region183: #{tpu_custom_call.1} parent=177 // loop_footer
          %s241 = sadd.s32 1, %s237
        $region184: #{tpu_custom_call.1} parent=177 // loop_footer_branch
          %236 = sbr.rel target = $region180
        $region185: #{tpu_custom_call.1} parent=177 // loop_exit
          _
      $region178: #{tpu_custom_call.1} parent=162 // pred_fallthru
        _
    $region163: #{tpu_custom_call.1} parent=1 // pred_fallthru
      _
    // Predicated region
    $region164: #{tpu_custom_call.1} parent=1 // pred_check
      _
    $region165: #{tpu_custom_call.1} parent=1 // pred_check_branch
      %219 = sbr.rel (0) target = $region167
    $region166: #{tpu_custom_call.1} parent=1 // pred_region
      %s221 = ssub.s32 2, 1
      loop: start=0, step=1, limit=1
      $region168: #{tpu_custom_call.1} parent=166 // loop_pre_header
        _
      $region169: #{tpu_custom_call.1} parent=166 // loop_header
        %s223 = sphi 0, %s227
        %p224 = scmp.ge.s32.totalorder %s223, 1
        %s228 = sphi %s213, %s213
        %s229 = sphi %s214, %s214
      $region170: #{tpu_custom_call.1} parent=166 // loop_header_branch
        %226 = sbr.rel (%p224) target = $region174
      $region171: #{tpu_custom_call.1} parent=166 // loop_body
        %v230 = vld [vmem:[%s228] sm:%s221]
        %231 = vst [vmem:[%s229] sm:%s221] %v230
      $region172: #{tpu_custom_call.1} parent=166 // loop_footer
        %s227 = sadd.s32 1, %s223
      $region173: #{tpu_custom_call.1} parent=166 // loop_footer_branch
        %222 = sbr.rel target = $region169
      $region174: #{tpu_custom_call.1} parent=166 // loop_exit
        _
    $region167: #{tpu_custom_call.1} parent=1 // pred_fallthru
      _
    // Predicated region
    $region186: #{tpu_custom_call.1} parent=1 // pred_check
      _
    $region187: #{tpu_custom_call.1} parent=1 // pred_check_branch
      %248 = sbr.rel (0) target = $region189
    $region188: #{tpu_custom_call.1} parent=1 // pred_region
      %249 = vsyncadd %s215, 16
    $region189: #{tpu_custom_call.1} parent=1 // pred_fallthru
      _
    %s250 = scalar_lea.vmem %s1, %s28
    %s251 = scalar_lea.vmem [#allocation2], 6
    %s252 = scalar_lea.sflag [#allocation3], 6
    // Predicated region
    $region190: #{tpu_custom_call.1} parent=1 // pred_check
      _
    $region191: #{tpu_custom_call.1} parent=1 // pred_check_branch
      %254 = sbr.rel target = $region193
    $region192: #{tpu_custom_call.1} parent=1 // pred_region
      // Predicated region
      $region205: #{tpu_custom_call.1} parent=192 // pred_check
        _
      $region206: #{tpu_custom_call.1} parent=192 // pred_check_branch
        %270 = sbr.rel (0) target = $region208
      $region207: #{tpu_custom_call.1} parent=192 // pred_region
        %s272 = ssub.s32 2, 1
        loop: start=0, step=1, limit=1
        $region209: #{tpu_custom_call.1} parent=207 // loop_pre_header
          _
        $region210: #{tpu_custom_call.1} parent=207 // loop_header
          %s274 = sphi 0, %s278
          %p275 = scmp.ge.s32.totalorder %s274, 1
          %s279 = sphi %s250, %s250
          %s280 = sphi %s251, %s251
        $region211: #{tpu_custom_call.1} parent=207 // loop_header_branch
          %277 = sbr.rel (%p275) target = $region215
        $region212: #{tpu_custom_call.1} parent=207 // loop_body
          %v281 = vld [vmem:[%s279] sm:%s272]
          %282 = vst [vmem:[%s280] sm:%s272] %v281
        $region213: #{tpu_custom_call.1} parent=207 // loop_footer
          %s278 = sadd.s32 1, %s274
        $region214: #{tpu_custom_call.1} parent=207 // loop_footer_branch
          %273 = sbr.rel target = $region210
        $region215: #{tpu_custom_call.1} parent=207 // loop_exit
          _
      $region208: #{tpu_custom_call.1} parent=192 // pred_fallthru
        _
    $region193: #{tpu_custom_call.1} parent=1 // pred_fallthru
      _
    // Predicated region
    $region194: #{tpu_custom_call.1} parent=1 // pred_check
      _
    $region195: #{tpu_custom_call.1} parent=1 // pred_check_branch
      %256 = sbr.rel (0) target = $region197
    $region196: #{tpu_custom_call.1} parent=1 // pred_region
      %s258 = ssub.s32 2, 1
      loop: start=0, step=1, limit=1
      $region198: #{tpu_custom_call.1} parent=196 // loop_pre_header
        _
      $region199: #{tpu_custom_call.1} parent=196 // loop_header
        %s260 = sphi 0, %s264
        %p261 = scmp.ge.s32.totalorder %s260, 1
        %s265 = sphi %s250, %s250
        %s266 = sphi %s251, %s251
      $region200: #{tpu_custom_call.1} parent=196 // loop_header_branch
        %263 = sbr.rel (%p261) target = $region204
      $region201: #{tpu_custom_call.1} parent=196 // loop_body
        %v267 = vld [vmem:[%s265] sm:%s258]
        %268 = vst [vmem:[%s266] sm:%s258] %v267
      $region202: #{tpu_custom_call.1} parent=196 // loop_footer
        %s264 = sadd.s32 1, %s260
      $region203: #{tpu_custom_call.1} parent=196 // loop_footer_branch
        %259 = sbr.rel target = $region199
      $region204: #{tpu_custom_call.1} parent=196 // loop_exit
        _
    $region197: #{tpu_custom_call.1} parent=1 // pred_fallthru
      _
    // Predicated region
    $region216: #{tpu_custom_call.1} parent=1 // pred_check
      _
    $region217: #{tpu_custom_call.1} parent=1 // pred_check_branch
      %285 = sbr.rel (0) target = $region219
    $region218: #{tpu_custom_call.1} parent=1 // pred_region
      %286 = vsyncadd %s252, 16
    $region219: #{tpu_custom_call.1} parent=1 // pred_fallthru
      _
    %s287 = scalar_lea.vmem %s1, %s29
    %s288 = scalar_lea.vmem [#allocation2], 7
    %s289 = scalar_lea.sflag [#allocation3], 7
    // Predicated region
    $region220: #{tpu_custom_call.1} parent=1 // pred_check
      _
    $region221: #{tpu_custom_call.1} parent=1 // pred_check_branch
      %291 = sbr.rel target = $region223
    $region222: #{tpu_custom_call.1} parent=1 // pred_region
      // Predicated region
      $region235: #{tpu_custom_call.1} parent=222 // pred_check
        _
      $region236: #{tpu_custom_call.1} parent=222 // pred_check_branch
        %307 = sbr.rel (0) target = $region238
      $region237: #{tpu_custom_call.1} parent=222 // pred_region
        %s309 = ssub.s32 2, 1
        loop: start=0, step=1, limit=1
        $region239: #{tpu_custom_call.1} parent=237 // loop_pre_header
          _
        $region240: #{tpu_custom_call.1} parent=237 // loop_header
          %s311 = sphi 0, %s315
          %p312 = scmp.ge.s32.totalorder %s311, 1
          %s316 = sphi %s287, %s287
          %s317 = sphi %s288, %s288
        $region241: #{tpu_custom_call.1} parent=237 // loop_header_branch
          %314 = sbr.rel (%p312) target = $region245
        $region242: #{tpu_custom_call.1} parent=237 // loop_body
          %v318 = vld [vmem:[%s316] sm:%s309]
          %319 = vst [vmem:[%s317] sm:%s309] %v318
        $region243: #{tpu_custom_call.1} parent=237 // loop_footer
          %s315 = sadd.s32 1, %s311
        $region244: #{tpu_custom_call.1} parent=237 // loop_footer_branch
          %310 = sbr.rel target = $region240
        $region245: #{tpu_custom_call.1} parent=237 // loop_exit
          _
      $region238: #{tpu_custom_call.1} parent=222 // pred_fallthru
        _
    $region223: #{tpu_custom_call.1} parent=1 // pred_fallthru
      _
    // Predicated region
    $region224: #{tpu_custom_call.1} parent=1 // pred_check
      _
    $region225: #{tpu_custom_call.1} parent=1 // pred_check_branch
      %293 = sbr.rel (0) target = $region227
    $region226: #{tpu_custom_call.1} parent=1 // pred_region
      %s295 = ssub.s32 2, 1
      loop: start=0, step=1, limit=1
      $region228: #{tpu_custom_call.1} parent=226 // loop_pre_header
        _
      $region229: #{tpu_custom_call.1} parent=226 // loop_header
        %s297 = sphi 0, %s301
        %p298 = scmp.ge.s32.totalorder %s297, 1
        %s302 = sphi %s287, %s287
        %s303 = sphi %s288, %s288
      $region230: #{tpu_custom_call.1} parent=226 // loop_header_branch
        %300 = sbr.rel (%p298) target = $region234
      $region231: #{tpu_custom_call.1} parent=226 // loop_body
        %v304 = vld [vmem:[%s302] sm:%s295]
        %305 = vst [vmem:[%s303] sm:%s295] %v304
      $region232: #{tpu_custom_call.1} parent=226 // loop_footer
        %s301 = sadd.s32 1, %s297
      $region233: #{tpu_custom_call.1} parent=226 // loop_footer_branch
        %296 = sbr.rel target = $region229
      $region234: #{tpu_custom_call.1} parent=226 // loop_exit
        _
    $region227: #{tpu_custom_call.1} parent=1 // pred_fallthru
      _
    // Predicated region
    $region246: #{tpu_custom_call.1} parent=1 // pred_check
      _
    $region247: #{tpu_custom_call.1} parent=1 // pred_check_branch
      %322 = sbr.rel (0) target = $region249
    $region248: #{tpu_custom_call.1} parent=1 // pred_region
      %323 = vsyncadd %s289, 16
    $region249: #{tpu_custom_call.1} parent=1 // pred_fallthru
      _
    %s324 = smul.u32 1, 1
    %s325 = sshll.u32 %s324, 4
    %326 = dma.done [#allocation3], %s325
    %s327 = sshll.u32 %s324, 4
    %328 = dma.done %s67, %s327
    %s329 = sshll.u32 %s324, 4
    %330 = dma.done %s104, %s329
    %s331 = sshll.u32 %s324, 4
    %332 = dma.done %s141, %s331
    %s333 = sshll.u32 %s324, 4
    %334 = dma.done %s178, %s333
    %s335 = sshll.u32 %s324, 4
    %336 = dma.done %s215, %s335
    %s337 = sshll.u32 %s324, 4
    %338 = dma.done %s252, %s337
    %s339 = sshll.u32 %s324, 4
    %340 = dma.done %s289, %s339
    %v341 = vld [vmem:[#allocation2] sm:$0xff]
    %v342 = vld [vmem:[%s2] sm:$0xff]
    %v343 = vld [vmem:[%s2 + $0x8] sm:$0xff]
    %v344 = vld [vmem:[%s2 + $0x10] sm:$0xff]
    %v345 = vld [vmem:[%s2 + $0x18] sm:$0xff]
    %v346 = vld [vmem:[%s2 + $0x20] sm:$0xff]
    %v347 = vld [vmem:[%s2 + $0x28] sm:$0xff]
    %v348 = vld [vmem:[%s2 + $0x30] sm:$0xff]
    %v349 = vld [vmem:[%s3] sm:$0x1]
    %v351 = vperm.slane %v349, 0
    %vm353 = vcmask 457728
    %v355 = vsel %vm353, %v341, 0
    %357 = vmatpush.msra.mxu0 0.0
    %358 = vmatpush.msra.mxu0 0.0
    %359 = vmatpush.msra.mxu0 0.0
    %360 = vmatpush.msra.mxu0 0.0
    %361 = vmatpush.msra.mxu0 0.0
    %362 = vmatpush.msra.mxu0 0.0
    %363 = vmatpush.msra.mxu0 0.0
    %364 = vmatpush.msra.mxu0 0.0
    %365 = vmatpush.msra.mxu0 0.0
    %366 = vmatpush.msra.mxu0 %v348
    %367 = vmatpush.msra.mxu0 %v347
    %368 = vmatpush.msra.mxu0 %v346
    %369 = vmatpush.msra.mxu0 %v345
    %370 = vmatpush.msra.mxu0 %v344
    %371 = vmatpush.msra.mxu0 %v343
    %372 = vmatpush.msra.mxu0 %v342
    %373 = vmatmul.f32.gmra.mxu0 %v355
    %v374 = vpop.f32.mrf.mxu0
    %v375 = vadd.f32 %v351, %v374
    %376 = vdwg.mxu0
    %v377 = vlaneseq
    %v378 = vshrl.u32 %v377, 7
    %vm379 = vcmp.lt.s32.totalorder %v378, 4
    %s380 = smul.u32 0, 128
    %v381 = vlaneseq
    %v382 = vand.u32 %v381, 127
    %v383 = vstv %s380
    %v384 = vadd.s32 %v383, %v382
    %vm385 = vcmp.lt.s32.totalorder %v384, 64
    %vm386 = vmand %vm379, %vm385
    %v387 = vsel %vm386, %v375, -1e+30
    %388 = vmax.xlane.f32.xlu0 %v387
    %v389 = vpop.xlane.xlu0 %388
    %v390 = vrot.slane %v389, 4
    %v391 = vmax.f32 %v389, %v390
    %v392 = vrot.slane %v391, 2
    %v393 = vmax.f32 %v391, %v392
    %v394 = vrot.slane %v393, 1
    %v395 = vmax.f32 %v393, %v394
    %v396 = vsub.f32 %v387, %v395
    %v397 = vmul.f32 %v396, 1.442695
    %v398 = vpow.pop %v397
    %399 = vadd.xlane.f32.xlu0 %v398
    %v400 = vpop.xlane.xlu0 %399
    %v401 = vrot.slane %v400, 4
    %v402 = vadd.f32 %v400, %v401
    %v403 = vrot.slane %v402, 2
    %v404 = vadd.f32 %v402, %v403
    %v405 = vrot.slane %v404, 1
    %v406 = vadd.f32 %v404, %v405
    %v407 = vlog2.pop %v406
    %v408 = vmul.f32 %v407, 0.6931472
    %v409 = vadd.f32 %v395, %v408
    %v410 = vsub.f32 %v375, %v409
    %411 = vst [vmem:[#allocation8] sm:$0xff] %v410
    // Predicated region
    $region250: #{tpu_custom_call.1} parent=1 // pred_check
      _
    $region251: #{tpu_custom_call.1} parent=1 // pred_check_branch
      %413 = sbr.rel (0) target = $region253
    $region252: #{tpu_custom_call.1} parent=1 // pred_region
      %415 = vsyncadd [#allocation9], 0
      %s417 = sshll.u32 [#allocation8], 4
      %s418 = int_to_ptr.vmem [resolvable:$true] %s417
      %s419 = sshll.u32 %s4, 4
      %s420 = int_to_ptr.hbm [resolvable:$true] %s419
      %422 = dma.vmem_to_hbm [thread:$0]  %s418, 128, %s420, [#allocation9]
    $region253: #{tpu_custom_call.1} parent=1 // pred_fallthru
      _
    // Predicated region
    $region254: #{tpu_custom_call.1} parent=1 // pred_check
      _
    $region255: #{tpu_custom_call.1} parent=1 // pred_check_branch
      %424 = sbr.rel (0) target = $region257
    $region256: #{tpu_custom_call.1} parent=1 // pred_region
      %426 = dma.done [#allocation9], 128
    $region257: #{tpu_custom_call.1} parent=1 // pred_fallthru
      _
    %427 = vsyncpa [#allocation9], 1
  %428 = vsyncmov [#allocation3]
  %s429 = vpop.sfrf %428
  %p430 = scmp.eq.s32.totalorder %s429, 0
  %p431 = pneg %p430
  %433 = shalt.err (%p431)
  %s434 = scalar_lea.sflag [#allocation3], 1
  %435 = vsyncmov %s434
  %s436 = vpop.sfrf %435
  %p437 = scmp.eq.s32.totalorder %s436, 0
  %p438 = pneg %p437
  %440 = shalt.err (%p438)
  %s441 = scalar_lea.sflag [#allocation3], 2
  %442 = vsyncmov %s441
  %s443 = vpop.sfrf %442
  %p444 = scmp.eq.s32.totalorder %s443, 0
  %p445 = pneg %p444
  %447 = shalt.err (%p445)
  %s448 = scalar_lea.sflag [#allocation3], 3
  %449 = vsyncmov %s448
  %s450 = vpop.sfrf %449
  %p451 = scmp.eq.s32.totalorder %s450, 0
  %p452 = pneg %p451
  %454 = shalt.err (%p452)
  %s455 = scalar_lea.sflag [#allocation3], 4
  %456 = vsyncmov %s455
  %s457 = vpop.sfrf %456
  %p458 = scmp.eq.s32.totalorder %s457, 0
  %p459 = pneg %p458
  %461 = shalt.err (%p459)
  %s462 = scalar_lea.sflag [#allocation3], 5
  %463 = vsyncmov %s462
  %s464 = vpop.sfrf %463
  %p465 = scmp.eq.s32.totalorder %s464, 0
  %p466 = pneg %p465
  %468 = shalt.err (%p466)
  %s469 = scalar_lea.sflag [#allocation3], 6
  %470 = vsyncmov %s469
  %s471 = vpop.sfrf %470
  %p472 = scmp.eq.s32.totalorder %s471, 0
  %p473 = pneg %p472
  %475 = shalt.err (%p473)
  %s476 = scalar_lea.sflag [#allocation3], 7
  %477 = vsyncmov %s476
  %s478 = vpop.sfrf %477
  %p479 = scmp.eq.s32.totalorder %s478, 0
  %p480 = pneg %p479
  %482 = shalt.err (%p480)

</llo_original>
